<compile_context>
chip_gen: v5e
topology: v5e:2x2
jax: 0.10.0
libtpu: 0.0.40
codegen_flags: <defaults>
</compile_context>

<pallas_src>
import math

import jax
import jax.numpy as jnp
from jax.experimental import pallas as pl
from jax.experimental.pallas import tpu as pltpu

_LOG_EPS = math.log(1e-9)


def _vmem_capacity_bytes() -> int:
    """Physical VMEM of the attached chip (fallback = v7x's 64 MiB)."""
    try:
        cap = int(getattr(pltpu.get_tpu_info(), "vmem_capacity_bytes", 0))
        if cap > 0:
            return cap
    except Exception:
        pass
    return 64 << 20


def _is_multi_tensorcore_chip() -> bool:
    """v7x has 2 TensorCores per chip; v5e/v6e have 1."""
    try:
        kind = jax.devices()[0].device_kind.lower()
    except Exception:
        return False
    return "v7" in kind


def _pick_block_rows(rows, lanes, pred_isz, label_isz, vmem_cap):
    """Rows per tile: big enough to amortize per-step overhead, small enough
    that pipeline buffers + full-tile f32 intermediates fit scoped VMEM on
    every generation (v7x: 64 MiB physical)."""
    # 2 pipeline buffers per input, held in the *input* dtype.
    per_row_inputs = 2 * lanes * (pred_isz + label_isz)
    # Allowance for compiler-materialized full-tile f32 intermediates
    # (x/y upcasts, xs, exp, logp, ...): ~4 tile-equivalents.
    per_row_interm = 4 * lanes * 4
    per_row = per_row_inputs + per_row_interm
    budget = max(8 << 20, vmem_cap // 4)   # ~32 MiB on v5e/v6e, ~16 MiB on v7x
    tb = budget // max(per_row, 1)
    tb = min(tb, 1024)                     # >=512-row tiles hit ~85% HBM roofline
    if tb >= rows:
        return rows                        # single full-array block
    mult = 8 if min(pred_isz, label_isz) >= 4 else 16   # bf16 sublane packing
    return max(mult, (tb // mult) * mult)


def _make_kernel(inv_M, valid_rows, TB, seg, n_seg, needs_mask, accumulate):
    """Kernel over (TB, n_seg*seg) blocks; each block row packs n_seg original
    rows of `seg` classes (n_seg == 1 means the unpacked layout)."""

    def _segmented(vals, reduce_fn):
        # Per-segment lane reduction, broadcast back to the segment's lanes.
        parts = []
        for s in range(n_seg):
            blk = vals[:, s * seg:(s + 1) * seg]
            r = reduce_fn(blk, axis=-1, keepdims=True)
            parts.append(jnp.broadcast_to(r, blk.shape))
        return jnp.concatenate(parts, axis=-1)

    def kernel(pred_ref, label_ref, out_ref):
        x = pred_ref[...].astype(jnp.float32) * inv_M
        y = label_ref[...].astype(jnp.float32)

        if needs_mask:
            # Padded rows of the last tile hold undefined VMEM contents: zero
            # BOTH x and y so no NaN/Inf can leak through via NaN * 0.
            row = pl.program_id(0) * TB + jax.lax.broadcasted_iota(
                jnp.int32, (TB, 1), 0)
            valid = row < valid_rows
            x = jnp.where(valid, x, 0.0)
            y = jnp.where(valid, y, 0.0)

        if n_seg == 1:
            m = jnp.max(x, axis=-1, keepdims=True)
            xs = x - m
            ps = jnp.sum(jnp.exp(xs), axis=-1, keepdims=True)
        else:
            # Lane-packed layout: full-lane elementwise, segmented reductions.
            m = _segmented(x, jnp.max)
            xs = x - m                               # full 128-lane VPU
            ps = _segmented(jnp.exp(xs), jnp.sum)    # exp at full 128-lane EUP

        logp = xs - jnp.log(ps)
        # Preserve torch's `softmax + 1e-9` guard by clamping at log(1e-9)
        # (differs only where the softmax underflows below ~1e-9).
        logp = jnp.maximum(logp, _LOG_EPS)
        tile_loss = -jnp.sum(y * logp)

        if accumulate:
            @pl.when(pl.program_id(0) == 0)
            def _():
                out_ref[0] = jnp.float32(0.0)
            out_ref[0] += tile_loss
        else:
            out_ref[0] = tile_loss

    return kernel


def list_all_loss(y_pred, y_label, M=0.5, block_rows=None, accumulate=None):
    """Pallas implementation of ListAllLoss.forward.  Inputs: (B, C).

    Inputs may be f32 or bf16 (upcast to f32 inside the kernel).  When
    `accumulate` is None the output mode is chosen from the chip: resident
    SMEM accumulator on single-TC chips, per-tile partials on multi-TC chips.
    """
    assert y_pred.shape == y_label.shape and y_pred.ndim == 2
    B, C = y_pred.shape
    inv_M = 1.0 / float(M)

    # Lane packing: fold g = 128 // C consecutive rows into one 128-lane row.
    g = 1
    if C < 128 and 128 % C == 0:
        cand = 128 // C
        if cand > 1 and B % cand == 0:
            g = cand
    if g > 1:
        y_pred = y_pred.reshape(B // g, g * C)
        y_label = y_label.reshape(B // g, g * C)
    rows, lanes = y_pred.shape

    pred_isz = jnp.dtype(y_pred.dtype).itemsize
    label_isz = jnp.dtype(y_label.dtype).itemsize
    vmem_cap = _vmem_capacity_bytes()

    TB = block_rows if block_rows is not None else _pick_block_rows(
        rows, lanes, pred_isz, label_isz, vmem_cap)
    TB = min(TB, rows)
    num_tiles = pl.cdiv(rows, TB)
    needs_mask = (rows % TB) != 0

    if accumulate is None:
        accumulate = not _is_multi_tensorcore_chip()

    # Deepen input pipelining only when tiles end up short (very large C):
    # a third buffer hides DMA issue latency behind the short per-tile compute.
    deep = (num_tiles >= 4) and (TB <= 256)

    def _in_spec():
        idx = lambda i: (i, 0)
        if deep:
            try:
                return pl.BlockSpec((TB, lanes), idx,
                                    pipeline_mode=pl.Buffered(3))
            except TypeError:  # jax build without pipeline_mode support
                pass
        return pl.BlockSpec((TB, lanes), idx)

    kernel = _make_kernel(inv_M, rows, TB, C, g, needs_mask, accumulate)

    if accumulate:
        # Resident scalar accumulator across the (arbitrary) grid axis.
        out_shape = jax.ShapeDtypeStruct((1,), jnp.float32)
        out_spec = pl.BlockSpec((1,), lambda i: (0,), memory_space=pltpu.SMEM)
        semantics = ("arbitrary",)
    else:
        # Independent per-tile partials -> reduce in the wrapper; lets both
        # TensorCores own disjoint tiles on v7x.
        out_shape = jax.ShapeDtypeStruct((num_tiles,), jnp.float32)
        out_spec = pl.BlockSpec((1,), lambda i: (i,), memory_space=pltpu.SMEM)
        semantics = ("parallel",)

    vmem_limit = int(min(vmem_cap * 3 // 4, max(32 << 20, vmem_cap // 2)))

    result = pl.pallas_call(
        kernel,
        out_shape=out_shape,
        grid=(num_tiles,),
        in_specs=[_in_spec(), _in_spec()],
        out_specs=out_spec,
        compiler_params=pltpu.CompilerParams(
            dimension_semantics=semantics,
            vmem_limit_bytes=vmem_limit),
    )(y_pred, y_label)

    return result[0] if accumulate else jnp.sum(result)


def _reference(y_pred, y_label, M=0.5):
    # Faithful to the PyTorch module: softmax + 1e-9, log, -sum (mean is no-op).
    p = jax.nn.softmax(y_pred.astype(jnp.float32) / M, axis=1) + 1e-9
    return -jnp.sum(y_label.astype(jnp.float32) * jnp.log(p))


if __name__ == "__main__":
    key = jax.random.PRNGKey(0)
    k1, k2, k3, k4, k5, k6 = jax.random.split(key, 6)

    # 1) Nominal module shape (batch=8, classes=32): lane-packed, single tile,
    #    chip-selected output mode.
    B, C = 8, 32
    p1 = jax.random.normal(k1, (B, C), dtype=jnp.float32)
    l1 = jax.nn.softmax(jax.random.normal(k2, (B, C), dtype=jnp.float32), axis=1)
    out1 = jax.block_until_ready(list_all_loss(p1, l1, M=0.5))
    ref1 = _reference(p1, l1, M=0.5)
    assert jnp.allclose(out1, ref1, rtol=1e-4, atol=1e-4), (out1, ref1)

    # 2) Lane-packed, multi-tile, uneven last tile (mask path), resident SMEM
    #    accumulator, Buffered(3) input pipeline.
    B2 = 176
    p2 = jax.random.normal(k3, (B2, C), dtype=jnp.float32)
    l2 = jax.nn.softmax(jax.random.normal(k4, (B2, C), dtype=jnp.float32), axis=1)
    out2 = jax.block_until_ready(
        list_all_loss(p2, l2, M=0.5, block_rows=8, accumulate=True))
    ref2 = _reference(p2, l2, M=0.5)
    assert jnp.allclose(out2, ref2, rtol=1e-4, atol=1e-4), (out2, ref2)

    # 3) Unpacked path (C >= 128), bf16 inputs, uneven last tile, per-tile
    #    partials output ("parallel" axis).
    B3, C3 = 24, 256
    p3 = jax.random.normal(k5, (B3, C3), dtype=jnp.float32).astype(jnp.bfloat16)
    l3 = jax.nn.softmax(jax.random.normal(k6, (B3, C3), dtype=jnp.float32),
                        axis=1).astype(jnp.bfloat16)
    out3 = jax.block_until_ready(
        list_all_loss(p3, l3, M=0.5, block_rows=16, accumulate=False))
    ref3 = _reference(p3, l3, M=0.5)
    assert jnp.allclose(out3, ref3, rtol=1e-4, atol=1e-3), (out3, ref3)

    print("KERNEL_OK")
</pallas_src>

<mosaic_0001>
module attributes {stable_mosaic.version = 11 : i64} {
  func.func @kernel(%arg0: i32, %arg1: memref<2x128xf32, #tpu.memory_space<vmem>>, %arg2: memref<2x128xf32, #tpu.memory_space<vmem>>, %arg3: memref<1xf32, #tpu.memory_space<smem>>) attributes {dimension_semantics = [#tpu.dimension_semantics<arbitrary>], iteration_bounds = array<i64: 1>, scalar_prefetch = 0 : i64, scratch_operands = 0 : i64, tpu.core_type = #tpu.core_type<tc>, window_params = [{transform_indices = @transform_0, window_bounds = array<i64: 2, 128>}, {transform_indices = @transform_1, window_bounds = array<i64: 2, 128>}, {transform_indices = @transform_2, window_bounds = array<i64: 1>}]} {
    %c0 = arith.constant 0 : index
    %c0_0 = arith.constant 0 : index
    %0 = vector.load %arg1[%c0, %c0_0] : memref<2x128xf32, #tpu.memory_space<vmem>>, vector<2x128xf32>
    %cst = arith.constant 2.000000e+00 : f32
    %1 = vector.broadcast %cst : f32 to vector<2x128xf32>
    %2 = arith.mulf %0, %1 : vector<2x128xf32>
    %c0_1 = arith.constant 0 : index
    %c0_2 = arith.constant 0 : index
    %3 = vector.load %arg2[%c0_1, %c0_2] : memref<2x128xf32, #tpu.memory_space<vmem>>, vector<2x128xf32>
    %4 = vector.extract_strided_slice %2 {offsets = [0, 0], sizes = [2, 32], strides = [1, 1]} : vector<2x128xf32> to vector<2x32xf32>
    %cst_3 = arith.constant dense<0xFF800000> : vector<2xf32>
    %5 = vector.multi_reduction <maximumf>, %4, %cst_3 [1] : vector<2x32xf32> to vector<2xf32>
    %6 = vector.shape_cast %5 : vector<2xf32> to vector<2x1xf32>
    %7 = vector.shape_cast %6 : vector<2x1xf32> to vector<2x1xf32>
    %8 = vector.broadcast %7 : vector<2x1xf32> to vector<2x32xf32>
    %9 = vector.extract_strided_slice %2 {offsets = [0, 32], sizes = [2, 32], strides = [1, 1]} : vector<2x128xf32> to vector<2x32xf32>
    %cst_4 = arith.constant dense<0xFF800000> : vector<2xf32>
    %10 = vector.multi_reduction <maximumf>, %9, %cst_4 [1] : vector<2x32xf32> to vector<2xf32>
    %11 = vector.shape_cast %10 : vector<2xf32> to vector<2x1xf32>
    %12 = vector.shape_cast %11 : vector<2x1xf32> to vector<2x1xf32>
    %13 = vector.broadcast %12 : vector<2x1xf32> to vector<2x32xf32>
    %14 = vector.extract_strided_slice %2 {offsets = [0, 64], sizes = [2, 32], strides = [1, 1]} : vector<2x128xf32> to vector<2x32xf32>
    %cst_5 = arith.constant dense<0xFF800000> : vector<2xf32>
    %15 = vector.multi_reduction <maximumf>, %14, %cst_5 [1] : vector<2x32xf32> to vector<2xf32>
    %16 = vector.shape_cast %15 : vector<2xf32> to vector<2x1xf32>
    %17 = vector.shape_cast %16 : vector<2x1xf32> to vector<2x1xf32>
    %18 = vector.broadcast %17 : vector<2x1xf32> to vector<2x32xf32>
    %19 = vector.extract_strided_slice %2 {offsets = [0, 96], sizes = [2, 32], strides = [1, 1]} : vector<2x128xf32> to vector<2x32xf32>
    %cst_6 = arith.constant dense<0xFF800000> : vector<2xf32>
    %20 = vector.multi_reduction <maximumf>, %19, %cst_6 [1] : vector<2x32xf32> to vector<2xf32>
    %21 = vector.shape_cast %20 : vector<2xf32> to vector<2x1xf32>
    %22 = vector.shape_cast %21 : vector<2x1xf32> to vector<2x1xf32>
    %23 = vector.broadcast %22 : vector<2x1xf32> to vector<2x32xf32>
    %24 = tpu.concatenate %8, %13, %18, %23 in 1 : vector<2x32xf32>, vector<2x32xf32>, vector<2x32xf32>, vector<2x32xf32> -> vector<2x128xf32>
    %25 = arith.subf %2, %24 : vector<2x128xf32>
    %26 = math.exp %25 : vector<2x128xf32>
    %27 = vector.extract_strided_slice %26 {offsets = [0, 0], sizes = [2, 32], strides = [1, 1]} : vector<2x128xf32> to vector<2x32xf32>
    %cst_7 = arith.constant dense<0.000000e+00> : vector<2xf32>
    %28 = vector.multi_reduction <add>, %27, %cst_7 [1] : vector<2x32xf32> to vector<2xf32>
    %29 = vector.shape_cast %28 : vector<2xf32> to vector<2x1xf32>
    %30 = vector.shape_cast %29 : vector<2x1xf32> to vector<2x1xf32>
    %31 = vector.broadcast %30 : vector<2x1xf32> to vector<2x32xf32>
    %32 = vector.extract_strided_slice %26 {offsets = [0, 32], sizes = [2, 32], strides = [1, 1]} : vector<2x128xf32> to vector<2x32xf32>
    %cst_8 = arith.constant dense<0.000000e+00> : vector<2xf32>
    %33 = vector.multi_reduction <add>, %32, %cst_8 [1] : vector<2x32xf32> to vector<2xf32>
    %34 = vector.shape_cast %33 : vector<2xf32> to vector<2x1xf32>
    %35 = vector.shape_cast %34 : vector<2x1xf32> to vector<2x1xf32>
    %36 = vector.broadcast %35 : vector<2x1xf32> to vector<2x32xf32>
    %37 = vector.extract_strided_slice %26 {offsets = [0, 64], sizes = [2, 32], strides = [1, 1]} : vector<2x128xf32> to vector<2x32xf32>
    %cst_9 = arith.constant dense<0.000000e+00> : vector<2xf32>
    %38 = vector.multi_reduction <add>, %37, %cst_9 [1] : vector<2x32xf32> to vector<2xf32>
    %39 = vector.shape_cast %38 : vector<2xf32> to vector<2x1xf32>
    %40 = vector.shape_cast %39 : vector<2x1xf32> to vector<2x1xf32>
    %41 = vector.broadcast %40 : vector<2x1xf32> to vector<2x32xf32>
    %42 = vector.extract_strided_slice %26 {offsets = [0, 96], sizes = [2, 32], strides = [1, 1]} : vector<2x128xf32> to vector<2x32xf32>
    %cst_10 = arith.constant dense<0.000000e+00> : vector<2xf32>
    %43 = vector.multi_reduction <add>, %42, %cst_10 [1] : vector<2x32xf32> to vector<2xf32>
    %44 = vector.shape_cast %43 : vector<2xf32> to vector<2x1xf32>
    %45 = vector.shape_cast %44 : vector<2x1xf32> to vector<2x1xf32>
    %46 = vector.broadcast %45 : vector<2x1xf32> to vector<2x32xf32>
    %47 = tpu.concatenate %31, %36, %41, %46 in 1 : vector<2x32xf32>, vector<2x32xf32>, vector<2x32xf32>, vector<2x32xf32> -> vector<2x128xf32>
    %48 = math.log %47 : vector<2x128xf32>
    %49 = arith.subf %25, %48 : vector<2x128xf32>
    %cst_11 = arith.constant -20.7232666 : f32
    %50 = vector.broadcast %cst_11 : f32 to vector<2x128xf32>
    %51 = arith.maximumf %49, %50 : vector<2x128xf32>
    %52 = arith.mulf %3, %51 : vector<2x128xf32>
    %53 = vector.shape_cast %52 : vector<2x128xf32> to vector<1x2x128xf32>
    %cst_12 = arith.constant dense<0.000000e+00> : vector<1xf32>
    %54 = vector.multi_reduction <add>, %53, %cst_12 [1, 2] : vector<1x2x128xf32> to vector<1xf32>
    %55 = vector.shape_cast %54 : vector<1xf32> to vector<1x1x1xf32>
    %56 = vector.extract %55[0, 0, 0] : f32 from vector<1x1x1xf32>
    %cst_13 = arith.constant 0.000000e+00 : f32
    %57 = arith.subf %cst_13, %56 : f32
    %c0_i32 = arith.constant 0 : i32
    %58 = arith.cmpi eq, %arg0, %c0_i32 : i32
    %59 = arith.extui %58 : i1 to i32
    %c0_i32_14 = arith.constant 0 : i32
    %60 = arith.cmpi ne, %59, %c0_i32_14 : i32
    scf.if %60 {
      %cst_17 = arith.constant 0.000000e+00 : f32
      %c0_18 = arith.constant 0 : index
      %64 = memref.load %arg3[%c0_18] : memref<1xf32, #tpu.memory_space<smem>>
      memref.store %cst_17, %arg3[%c0_18] : memref<1xf32, #tpu.memory_space<smem>>
    } else {
    }
    %c0_15 = arith.constant 0 : index
    %61 = memref.load %arg3[%c0_15] : memref<1xf32, #tpu.memory_space<smem>>
    %62 = arith.addf %61, %57 : f32
    %c0_16 = arith.constant 0 : index
    %63 = memref.load %arg3[%c0_16] : memref<1xf32, #tpu.memory_space<smem>>
    memref.store %62, %arg3[%c0_16] : memref<1xf32, #tpu.memory_space<smem>>
    return
  }
  func.func @transform_0(%arg0: i32) -> (i32, i32) {
    %c0_i32 = arith.constant 0 : i32
    %c0_i32_0 = arith.constant 0 : i32
    return %arg0, %c0_i32 : i32, i32
  }
  func.func @transform_1(%arg0: i32) -> (i32, i32) {
    %c0_i32 = arith.constant 0 : i32
    %c0_i32_0 = arith.constant 0 : i32
    return %arg0, %c0_i32 : i32, i32
  }
  func.func @transform_2(%arg0: i32) -> i32 {
    %c0_i32 = arith.constant 0 : i32
    %c0_i32_0 = arith.constant 0 : i32
    return %c0_i32 : i32
  }
}

</mosaic_0001>

<llo_original>
// kernel: tpu_custom_call.1
$region0: #{tpu_custom_call.1}
  #allocation0 [shape = 'u32[]', space=smem, size = 0x4, offset = 0x4, fixed_abs, tag = 'smem constant byte address 0x4 - core index']
  #allocation1 [shape = 'u32[72,128]{1,0:T(1,128)}', space=vmem, size = 0x9000, scoped, tag = 'internal scratch']
  %s0 = inlined_call_operand.hbm [shape: f32[2,128], index: 0, kind: input, shape index: {}]
  %s1 = inlined_call_operand.hbm [shape: f32[2,128], index: 1, kind: input, shape index: {}]
  %s2 = inlined_call_operand.hbm [shape: f32[1], index: 2, kind: output, shape index: {}]
  %s3 = sld [smem:[#allocation0]]
  $region30: #{tpu_custom_call.1} parent=0
    _
  %s5 = ssub.s32 1, %s3
  %s6 = scalar_select 0, %s5, %s3
  $region1: #{tpu_custom_call.1} parent=0
    #allocation2 [shape = 'u8[1024]{0}', space=vmem, size = 0x400, scoped, tag = 'input window, operand 0, single buffered']
    #allocation3 [shape = 's32[1]{0}', space=sflag, size = 0x4, scoped, tag = 'scoped memory for tpu_custom_call.1']
    #allocation4 [shape = 's32[1]{0}', space=sflag, size = 0x4, scoped, tag = 'scoped memory for tpu_custom_call.1']
    #allocation5 [shape = 'u8[1024]{0}', space=vmem, size = 0x400, scoped, tag = 'input window, operand 1, single buffered']
    #allocation6 [shape = 's32[1]{0}', space=sflag, size = 0x4, scoped, tag = 'scoped memory for tpu_custom_call.1']
    #allocation7 [shape = 'u8[512]{0}', space=smem, size = 0x200, scoped, tag = 'output window, operand 0, single buffered']
    %7 = vsyncpa [#allocation3], 0
    %8 = vsyncpa [#allocation6], 0
    %9 = vsyncpa [#allocation4], 0
    // Predicated region
    $region2: #{tpu_custom_call.1} parent=1 // pred_check
      _
    $region3: #{tpu_custom_call.1} parent=1 // pred_check_branch
      %11 = sbr.rel (0) target = $region5
    $region4: #{tpu_custom_call.1} parent=1 // pred_region
      %13 = vsyncadd [#allocation3], 0
      %s15 = sshll.u32 %s0, 4
      %s16 = int_to_ptr.hbm [resolvable:$true] %s15
      %s17 = sshll.u32 [#allocation2], 4
      %s18 = int_to_ptr.vmem [resolvable:$true] %s17
      %20 = dma.hbm_to_vmem [thread:$0]  %s16, 32, %s18, [#allocation3]
    $region5: #{tpu_custom_call.1} parent=1 // pred_fallthru
      _
    // Predicated region
    $region6: #{tpu_custom_call.1} parent=1 // pred_check
      _
    $region7: #{tpu_custom_call.1} parent=1 // pred_check_branch
      %22 = sbr.rel (0) target = $region9
    $region8: #{tpu_custom_call.1} parent=1 // pred_region
      %24 = vsyncadd [#allocation6], 0
      %s26 = sshll.u32 %s1, 4
      %s27 = int_to_ptr.hbm [resolvable:$true] %s26
      %s28 = sshll.u32 [#allocation5], 4
      %s29 = int_to_ptr.vmem [resolvable:$true] %s28
      %31 = dma.hbm_to_vmem [thread:$0]  %s27, 32, %s29, [#allocation6]
    $region9: #{tpu_custom_call.1} parent=1 // pred_fallthru
      _
    // Predicated region
    $region10: #{tpu_custom_call.1} parent=1 // pred_check
      _
    $region11: #{tpu_custom_call.1} parent=1 // pred_check_branch
      %33 = sbr.rel (0) target = $region13
    $region12: #{tpu_custom_call.1} parent=1 // pred_region
      %35 = dma.done [#allocation3], 32
    $region13: #{tpu_custom_call.1} parent=1 // pred_fallthru
      _
    // Predicated region
    $region14: #{tpu_custom_call.1} parent=1 // pred_check
      _
    $region15: #{tpu_custom_call.1} parent=1 // pred_check_branch
      %37 = sbr.rel (0) target = $region17
    $region16: #{tpu_custom_call.1} parent=1 // pred_region
      %39 = dma.done [#allocation6], 32
    $region17: #{tpu_custom_call.1} parent=1 // pred_fallthru
      _
    %v40 = vld [vmem:[#allocation2] sm:$0x3]
    %v41 = vmul.f32 %v40, 2.0
    %v42 = vld [vmem:[#allocation5] sm:$0x3]
    %vm43 = vcmask 254976
    %v44 = vsel %vm43, %v41, -inf
    %45 = vmax.xlane.f32.xlu0 %v44
    %v46 = vpop.xlane.xlu0 %45
    %vm47 = vcmask 517376
    %v48 = vsel %vm47, %v41, -inf
    %49 = vmax.xlane.f32.xlu0 %v48
    %v50 = vpop.xlane.xlu0 %49
    %vm51 = vcmask 779776
    %v52 = vsel %vm51, %v41, -inf
    %53 = vmax.xlane.f32.xlu0 %v52
    %v54 = vpop.xlane.xlu0 %53
    %vm55 = vcmask 1042176
    %v56 = vsel %vm55, %v41, -inf
    %57 = vmax.xlane.f32.xlu0 %v56
    %v58 = vpop.xlane.xlu0 %57
    %vm59 = vcmask 261120
    %v60 = vsel %vm59, %v46, %v50
    %vm61 = vcmask 523264
    %v62 = vsel %vm61, %v60, %v54
    %vm63 = vcmask 785408
    %v64 = vsel %vm63, %v62, %v58
    %v65 = vsub.f32 %v41, %v64
    %v66 = vmul.f32 %v65, 1.442695
    %v67 = vpow.pop %v66
    %v68 = vsel %vm43, %v67, 0.0
    %69 = vadd.xlane.f32.xlu0 %v68
    %v70 = vpop.xlane.xlu0 %69
    %72 = vrot.lane.b32.xlu0 %v67, 96
    %v73 = vpop.permute.xlu0 %72
    %v75 = vsel %vm43, %v73, 0.0
    %76 = vadd.xlane.f32.xlu0 %v75
    %v77 = vpop.xlane.xlu0 %76
    %78 = vrot.lane.b32.xlu0 %v67, 64
    %v79 = vpop.permute.xlu0 %78
    %v81 = vsel %vm43, %v79, 0.0
    %82 = vadd.xlane.f32.xlu0 %v81
    %v83 = vpop.xlane.xlu0 %82
    %84 = vrot.lane.b32.xlu0 %v67, 32
    %v85 = vpop.permute.xlu0 %84
    %v87 = vsel %vm43, %v85, 0.0
    %88 = vadd.xlane.f32.xlu0 %v87
    %v89 = vpop.xlane.xlu0 %88
    %v90 = vsel %vm59, %v70, %v77
    %v91 = vsel %vm61, %v90, %v83
    %v92 = vsel %vm63, %v91, %v89
    %v93 = vlog2.pop %v92
    %v94 = vmul.f32 %v93, 0.6931472
    %v95 = vsub.f32 %v65, %v94
    %v96 = vmax.f32 %v95, -20.723267
    %v97 = vmul.f32 %v42, %v96
    %vm98 = vcmask 1041408
    %v99 = vsel %vm98, %v97, 0.0
    %100 = vadd.xlane.f32.xlu0 %v99
    %v101 = vpop.xlane.xlu0 %100
    %v102 = vrot.slane %v101, 4
    %v103 = vadd.f32 %v101, %v102
    %v104 = vrot.slane %v103, 2
    %v105 = vadd.f32 %v103, %v104
    %v106 = vrot.slane %v105, 1
    %v107 = vadd.f32 %v105, %v106
    %s108 = vtos %v107
    %s109 = ssub.f32 0.0, %s108
    %p110 = scmp.eq.s32.totalorder 0, 0
    // Predicated region
    $region18: #{tpu_custom_call.1} parent=1 // pred_check
      %p111 = pneg %p110
    $region19: #{tpu_custom_call.1} parent=1 // pred_check_branch
      %113 = sbr.rel (%p111) target = $region21
    $region20: #{tpu_custom_call.1} parent=1 // pred_region
      %s114 = scalar_lea.smem [#allocation7], 0
      %115 = sst [smem:[%s114]] 0.0
    $region21: #{tpu_custom_call.1} parent=1 // pred_fallthru
      _
    %s116 = sld [smem:[#allocation7]]
    %s117 = sadd.f32 %s116, %s109
    %s118 = scalar_lea.smem [#allocation7], 0
    %119 = sst [smem:[%s118]] %s117
    // Predicated region
    $region22: #{tpu_custom_call.1} parent=1 // pred_check
      _
    $region23: #{tpu_custom_call.1} parent=1 // pred_check_branch
      %121 = sbr.rel (0) target = $region25
    $region24: #{tpu_custom_call.1} parent=1 // pred_region
      %123 = vsyncadd [#allocation4], 0
      %s125 = sshll.u32 %s2, 4
      %s126 = int_to_ptr.hbm [resolvable:$true] %s125
      %128 = dma.smem_to_hbm [#allocation7], 16, %s126, [#allocation4]
    $region25: #{tpu_custom_call.1} parent=1 // pred_fallthru
      _
    // Predicated region
    $region26: #{tpu_custom_call.1} parent=1 // pred_check
      _
    $region27: #{tpu_custom_call.1} parent=1 // pred_check_branch
      %130 = sbr.rel (0) target = $region29
    $region28: #{tpu_custom_call.1} parent=1 // pred_region
      %132 = dma.done [#allocation4], 16
    $region29: #{tpu_custom_call.1} parent=1 // pred_fallthru
      _
    %133 = sfence
    %134 = vsyncpa [#allocation3], 1
    %135 = vsyncpa [#allocation6], 1
    %136 = vsyncpa [#allocation4], 1

</llo_original>
